<compile_context>
chip_gen: v5e
topology: v5e:2x2
jax: 0.10.0
libtpu: 0.0.40
codegen_flags: <defaults>
</compile_context>

<pallas_src>
import jax
import jax.numpy as jnp
from jax.experimental import pallas as pl
from jax.experimental.pallas import tpu as pltpu


def _leaky_relu(x, slope=0.2):
    return jnp.where(x >= 0, x, slope * x)


def _mlp_channel_block_kernel(x_ref, w1_ref, b1_ref, w2_ref, b2_ref,
                              w3_ref, b3_ref, o_ref):
    # Block shapes:
    #   x_ref : (CB, B, 1)
    #   w1/b1 : (CB, 1, 64)
    #   w2    : (CB, 64, 256)   b2: (CB, 1, 256)
    #   w3    : (CB, 256, SSp)  b3: (CB, 1, SSp)
    #   o_ref : (B, CB*SSp)
    cb = w2_ref.shape[0]
    ssp = w3_ref.shape[2]
    for c in range(cb):  # static unroll over the channel block
        x_c = x_ref[c]                                   # (B, 1)
        # Layer 1: K=1 contraction == outer product -> VPU broadcast mul-add.
        h1 = _leaky_relu(x_c * w1_ref[c] + b1_ref[c])    # (B, 64)
        # Layer 2: (B,64) @ (64,256) on the MXU, f32 accumulate.
        h2 = _leaky_relu(
            jnp.dot(h1, w2_ref[c], preferred_element_type=jnp.float32)
            + b2_ref[c])                                 # (B, 256)
        # Layer 3: (B,256) @ (256,SSp).
        h3 = (jnp.dot(h2, w3_ref[c], preferred_element_type=jnp.float32)
              + b3_ref[c])                               # (B, SSp)
        # Lane-aligned slab store (c*SSp is a multiple of 128).
        o_ref[:, c * ssp:(c + 1) * ssp] = h3.astype(o_ref.dtype)


def _pick_channel_block(C, max_cb=8):
    """Largest divisor of C (<= max_cb) that still leaves >=2 grid steps
    (so v7x can split the 'parallel' axis across its two TensorCores)."""
    divisors = [d for d in range(1, min(C, max_cb) + 1) if C % d == 0]
    at_least_two = [d for d in divisors if C // d >= 2]
    return max(at_least_two) if at_least_two else max(divisors)


def multi_to_2d_channel(x, params, image_size, channel_block=None):
    """x: [B, C] float32.  Returns [B, C, image_size, image_size]."""
    B, C = x.shape
    S = image_size
    SS = S * S
    # Pad layer-3 output dim to a multiple of 128 lanes (unmasked vst stores).
    SS_pad = max(128, ((SS + 127) // 128) * 128)
    w1, b1, w2, b2, w3, b3 = params
    if SS_pad != SS:
        pad = SS_pad - SS
        w3 = jnp.pad(w3, ((0, 0), (0, 0), (0, pad)))
        b3 = jnp.pad(b3, ((0, 0), (0, 0), (0, pad)))

    CB = channel_block if channel_block is not None else _pick_channel_block(C)
    assert C % CB == 0, (C, CB)

    # Channel-major view of x so the grid iterates channel blocks; tiny tensor.
    x_pc = jnp.transpose(x, (1, 0))[:, :, None]          # (C, B, 1)

    out = pl.pallas_call(
        _mlp_channel_block_kernel,
        out_shape=jax.ShapeDtypeStruct((B, C * SS_pad), jnp.float32),
        grid_spec=pltpu.PrefetchScalarGridSpec(
            num_scalar_prefetch=0,
            grid=(C // CB,),
            in_specs=[
                pl.BlockSpec((CB, B, 1),       lambda i: (i, 0, 0)),   # x_pc
                pl.BlockSpec((CB, 1, 64),      lambda i: (i, 0, 0)),   # W1
                pl.BlockSpec((CB, 1, 64),      lambda i: (i, 0, 0)),   # b1
                pl.BlockSpec((CB, 64, 256),    lambda i: (i, 0, 0)),   # W2
                pl.BlockSpec((CB, 1, 256),     lambda i: (i, 0, 0)),   # b2
                pl.BlockSpec((CB, 256, SS_pad), lambda i: (i, 0, 0)),  # W3
                pl.BlockSpec((CB, 1, SS_pad),  lambda i: (i, 0, 0)),   # b3
            ],
            # Lane-dense output slab: (B, CB*SS_pad), disjoint per grid step.
            out_specs=pl.BlockSpec((B, CB * SS_pad), lambda i: (0, i)),
        ),
        compiler_params=pltpu.CompilerParams(
            dimension_semantics=("parallel",)),
    )(x_pc, w1, b1, w2, b2, w3, b3)

    # (B, C*SS_pad) -> (B, C, SS_pad) -> [:, :, :SS] -> (B, C, S, S); no HBM
    # transpose pass any more (reshape is free, slice only if padding was added).
    out = out.reshape(B, C, SS_pad)
    if SS_pad != SS:
        out = out[:, :, :SS]
    return out.reshape(B, C, S, S)


def make_params(key, input_dim, image_size):
    """Deterministic per-channel MLP params (synthetic init, not a checkpoint)."""
    SS = image_size * image_size
    ks = jax.random.split(key, 6)
    # Scaled-normal init (stands in for init_layers); weights stored as (in, out).
    w1 = jax.random.normal(ks[0], (input_dim, 1, 64),    jnp.float32) * 1.0
    b1 = jax.random.normal(ks[1], (input_dim, 1, 64),    jnp.float32) * 0.01
    w2 = jax.random.normal(ks[2], (input_dim, 64, 256),  jnp.float32) * (1.0 / 8.0)
    b2 = jax.random.normal(ks[3], (input_dim, 1, 256),   jnp.float32) * 0.01
    w3 = jax.random.normal(ks[4], (input_dim, 256, SS),  jnp.float32) * (1.0 / 16.0)
    b3 = jax.random.normal(ks[5], (input_dim, 1, SS),    jnp.float32) * 0.01
    return (w1, b1, w2, b2, w3, b3)


def reference_forward(x, params):
    """Pure-JAX reference replicating the PyTorch forward."""
    w1, b1, w2, b2, w3, b3 = params
    B, C = x.shape
    outs = []
    for i in range(C):
        h = x[:, i:i + 1]                              # [B, 1]
        h = _leaky_relu(h @ w1[i] + b1[i])             # [B, 64]
        h = _leaky_relu(h @ w2[i] + b2[i])             # [B, 256]
        h = h @ w3[i] + b3[i]                          # [B, S*S]
        outs.append(h)
    SS = w3.shape[-1]
    S = int(SS ** 0.5)
    return jnp.stack(outs, axis=1).reshape(B, C, S, S)


if __name__ == "__main__":
    B, C, S = 2, 4, 16                 # batch, input_dim, image_size
    key = jax.random.PRNGKey(0)
    kx, kp = jax.random.split(key)
    x = jax.random.normal(kx, (B, C), jnp.float32)
    params = make_params(kp, C, S)

    out = multi_to_2d_channel(x, params, S)            # CB auto-picked (=2 here)
    out = jax.block_until_ready(out)

    ref = reference_forward(x, params)
    assert out.shape == (B, C, S, S), out.shape
    assert jnp.allclose(out, ref, atol=1e-4, rtol=1e-4), \
        float(jnp.max(jnp.abs(out - ref)))
    print("KERNEL_OK")
</pallas_src>

<mosaic_0001>
module attributes {stable_mosaic.version = 11 : i64} {
  func.func @_mlp_channel_block_kernel(%arg0: i32, %arg1: memref<2x2x1xf32, #tpu.memory_space<vmem>>, %arg2: memref<2x1x64xf32, #tpu.memory_space<vmem>>, %arg3: memref<2x1x64xf32, #tpu.memory_space<vmem>>, %arg4: memref<2x64x256xf32, #tpu.memory_space<vmem>>, %arg5: memref<2x1x256xf32, #tpu.memory_space<vmem>>, %arg6: memref<2x256x256xf32, #tpu.memory_space<vmem>>, %arg7: memref<2x1x256xf32, #tpu.memory_space<vmem>>, %arg8: memref<2x512xf32, #tpu.memory_space<vmem>>) attributes {dimension_semantics = [#tpu.dimension_semantics<parallel>], iteration_bounds = array<i64: 2>, scalar_prefetch = 0 : i64, scratch_operands = 0 : i64, tpu.core_type = #tpu.core_type<tc>, window_params = [{transform_indices = @transform_0, window_bounds = array<i64: 2, 2, 1>}, {transform_indices = @transform_1, window_bounds = array<i64: 2, 1, 64>}, {transform_indices = @transform_2, window_bounds = array<i64: 2, 1, 64>}, {transform_indices = @transform_3, window_bounds = array<i64: 2, 64, 256>}, {transform_indices = @transform_4, window_bounds = array<i64: 2, 1, 256>}, {transform_indices = @transform_5, window_bounds = array<i64: 2, 256, 256>}, {transform_indices = @transform_6, window_bounds = array<i64: 2, 1, 256>}, {transform_indices = @transform_7, window_bounds = array<i64: 2, 512>}]} {
    %c0 = arith.constant 0 : index
    %c0_0 = arith.constant 0 : index
    %c0_1 = arith.constant 0 : index
    %0 = vector.load %arg1[%c0, %c0_0, %c0_1] : memref<2x2x1xf32, #tpu.memory_space<vmem>>, vector<1x2x1xf32>
    %1 = vector.shape_cast %0 : vector<1x2x1xf32> to vector<2x1xf32>
    %c0_2 = arith.constant 0 : index
    %c0_3 = arith.constant 0 : index
    %c0_4 = arith.constant 0 : index
    %2 = vector.load %arg2[%c0_2, %c0_3, %c0_4] : memref<2x1x64xf32, #tpu.memory_space<vmem>>, vector<1x1x64xf32>
    %3 = vector.shape_cast %2 : vector<1x1x64xf32> to vector<1x64xf32>
    %4 = vector.broadcast %1 : vector<2x1xf32> to vector<2x64xf32>
    %5 = vector.broadcast %3 : vector<1x64xf32> to vector<2x64xf32>
    %6 = arith.mulf %4, %5 : vector<2x64xf32>
    %c0_5 = arith.constant 0 : index
    %c0_6 = arith.constant 0 : index
    %c0_7 = arith.constant 0 : index
    %7 = vector.load %arg3[%c0_5, %c0_6, %c0_7] : memref<2x1x64xf32, #tpu.memory_space<vmem>>, vector<1x1x64xf32>
    %8 = vector.shape_cast %7 : vector<1x1x64xf32> to vector<1x64xf32>
    %9 = vector.broadcast %8 : vector<1x64xf32> to vector<2x64xf32>
    %10 = arith.addf %6, %9 : vector<2x64xf32>
    %cst = arith.constant 0.000000e+00 : f32
    %11 = vector.broadcast %cst : f32 to vector<2x64xf32>
    %12 = arith.cmpf oge, %10, %11 : vector<2x64xf32>
    %cst_8 = arith.constant 2.000000e-01 : f32
    %13 = vector.broadcast %cst_8 : f32 to vector<2x64xf32>
    %14 = arith.mulf %13, %10 : vector<2x64xf32>
    %15 = arith.select %12, %10, %14 : vector<2x64xi1>, vector<2x64xf32>
    %c0_9 = arith.constant 0 : index
    %c0_10 = arith.constant 0 : index
    %c0_11 = arith.constant 0 : index
    %16 = vector.load %arg4[%c0_9, %c0_10, %c0_11] : memref<2x64x256xf32, #tpu.memory_space<vmem>>, vector<1x64x256xf32>
    %17 = vector.shape_cast %16 : vector<1x64x256xf32> to vector<64x256xf32>
    %cst_12 = arith.constant dense<0.000000e+00> : vector<2x256xf32>
    %18 = tpu.matmul %15, %17, %cst_12 {dimension_numbers = #tpu.dot_dimension_numbers<[1], [0], [0], [1], [0, 0, 1, 1], [], []>} : vector<2x64xf32>, vector<64x256xf32>, vector<2x256xf32> -> vector<2x256xf32>
    %c0_13 = arith.constant 0 : index
    %c0_14 = arith.constant 0 : index
    %c0_15 = arith.constant 0 : index
    %19 = vector.load %arg5[%c0_13, %c0_14, %c0_15] : memref<2x1x256xf32, #tpu.memory_space<vmem>>, vector<1x1x256xf32>
    %20 = vector.shape_cast %19 : vector<1x1x256xf32> to vector<1x256xf32>
    %21 = vector.broadcast %20 : vector<1x256xf32> to vector<2x256xf32>
    %22 = arith.addf %18, %21 : vector<2x256xf32>
    %cst_16 = arith.constant 0.000000e+00 : f32
    %23 = vector.broadcast %cst_16 : f32 to vector<2x256xf32>
    %24 = arith.cmpf oge, %22, %23 : vector<2x256xf32>
    %cst_17 = arith.constant 2.000000e-01 : f32
    %25 = vector.broadcast %cst_17 : f32 to vector<2x256xf32>
    %26 = arith.mulf %25, %22 : vector<2x256xf32>
    %27 = arith.select %24, %22, %26 : vector<2x256xi1>, vector<2x256xf32>
    %c0_18 = arith.constant 0 : index
    %c0_19 = arith.constant 0 : index
    %c0_20 = arith.constant 0 : index
    %28 = vector.load %arg6[%c0_18, %c0_19, %c0_20] : memref<2x256x256xf32, #tpu.memory_space<vmem>>, vector<1x256x256xf32>
    %29 = vector.shape_cast %28 : vector<1x256x256xf32> to vector<256x256xf32>
    %cst_21 = arith.constant dense<0.000000e+00> : vector<2x256xf32>
    %30 = tpu.matmul %27, %29, %cst_21 {dimension_numbers = #tpu.dot_dimension_numbers<[1], [0], [0], [1], [0, 0, 1, 1], [], []>} : vector<2x256xf32>, vector<256x256xf32>, vector<2x256xf32> -> vector<2x256xf32>
    %c0_22 = arith.constant 0 : index
    %c0_23 = arith.constant 0 : index
    %c0_24 = arith.constant 0 : index
    %31 = vector.load %arg7[%c0_22, %c0_23, %c0_24] : memref<2x1x256xf32, #tpu.memory_space<vmem>>, vector<1x1x256xf32>
    %32 = vector.shape_cast %31 : vector<1x1x256xf32> to vector<1x256xf32>
    %33 = vector.broadcast %32 : vector<1x256xf32> to vector<2x256xf32>
    %34 = arith.addf %30, %33 : vector<2x256xf32>
    %c0_25 = arith.constant 0 : index
    %c0_26 = arith.constant 0 : index
    %35 = vector.load %arg8[%c0_25, %c0_26] : memref<2x512xf32, #tpu.memory_space<vmem>>, vector<2x256xf32>
    tpu.vector_store %arg8[%c0_25, %c0_26], %34 {strides = array<i32>} : memref<2x512xf32, #tpu.memory_space<vmem>>, vector<2x256xf32>,
    %c1 = arith.constant 1 : index
    %c0_27 = arith.constant 0 : index
    %c0_28 = arith.constant 0 : index
    %36 = vector.load %arg1[%c1, %c0_27, %c0_28] : memref<2x2x1xf32, #tpu.memory_space<vmem>>, vector<1x2x1xf32>
    %37 = vector.shape_cast %36 : vector<1x2x1xf32> to vector<2x1xf32>
    %c1_29 = arith.constant 1 : index
    %c0_30 = arith.constant 0 : index
    %c0_31 = arith.constant 0 : index
    %38 = vector.load %arg2[%c1_29, %c0_30, %c0_31] : memref<2x1x64xf32, #tpu.memory_space<vmem>>, vector<1x1x64xf32>
    %39 = vector.shape_cast %38 : vector<1x1x64xf32> to vector<1x64xf32>
    %40 = vector.broadcast %37 : vector<2x1xf32> to vector<2x64xf32>
    %41 = vector.broadcast %39 : vector<1x64xf32> to vector<2x64xf32>
    %42 = arith.mulf %40, %41 : vector<2x64xf32>
    %c1_32 = arith.constant 1 : index
    %c0_33 = arith.constant 0 : index
    %c0_34 = arith.constant 0 : index
    %43 = vector.load %arg3[%c1_32, %c0_33, %c0_34] : memref<2x1x64xf32, #tpu.memory_space<vmem>>, vector<1x1x64xf32>
    %44 = vector.shape_cast %43 : vector<1x1x64xf32> to vector<1x64xf32>
    %45 = vector.broadcast %44 : vector<1x64xf32> to vector<2x64xf32>
    %46 = arith.addf %42, %45 : vector<2x64xf32>
    %cst_35 = arith.constant 0.000000e+00 : f32
    %47 = vector.broadcast %cst_35 : f32 to vector<2x64xf32>
    %48 = arith.cmpf oge, %46, %47 : vector<2x64xf32>
    %cst_36 = arith.constant 2.000000e-01 : f32
    %49 = vector.broadcast %cst_36 : f32 to vector<2x64xf32>
    %50 = arith.mulf %49, %46 : vector<2x64xf32>
    %51 = arith.select %48, %46, %50 : vector<2x64xi1>, vector<2x64xf32>
    %c1_37 = arith.constant 1 : index
    %c0_38 = arith.constant 0 : index
    %c0_39 = arith.constant 0 : index
    %52 = vector.load %arg4[%c1_37, %c0_38, %c0_39] : memref<2x64x256xf32, #tpu.memory_space<vmem>>, vector<1x64x256xf32>
    %53 = vector.shape_cast %52 : vector<1x64x256xf32> to vector<64x256xf32>
    %cst_40 = arith.constant dense<0.000000e+00> : vector<2x256xf32>
    %54 = tpu.matmul %51, %53, %cst_40 {dimension_numbers = #tpu.dot_dimension_numbers<[1], [0], [0], [1], [0, 0, 1, 1], [], []>} : vector<2x64xf32>, vector<64x256xf32>, vector<2x256xf32> -> vector<2x256xf32>
    %c1_41 = arith.constant 1 : index
    %c0_42 = arith.constant 0 : index
    %c0_43 = arith.constant 0 : index
    %55 = vector.load %arg5[%c1_41, %c0_42, %c0_43] : memref<2x1x256xf32, #tpu.memory_space<vmem>>, vector<1x1x256xf32>
    %56 = vector.shape_cast %55 : vector<1x1x256xf32> to vector<1x256xf32>
    %57 = vector.broadcast %56 : vector<1x256xf32> to vector<2x256xf32>
    %58 = arith.addf %54, %57 : vector<2x256xf32>
    %cst_44 = arith.constant 0.000000e+00 : f32
    %59 = vector.broadcast %cst_44 : f32 to vector<2x256xf32>
    %60 = arith.cmpf oge, %58, %59 : vector<2x256xf32>
    %cst_45 = arith.constant 2.000000e-01 : f32
    %61 = vector.broadcast %cst_45 : f32 to vector<2x256xf32>
    %62 = arith.mulf %61, %58 : vector<2x256xf32>
    %63 = arith.select %60, %58, %62 : vector<2x256xi1>, vector<2x256xf32>
    %c1_46 = arith.constant 1 : index
    %c0_47 = arith.constant 0 : index
    %c0_48 = arith.constant 0 : index
    %64 = vector.load %arg6[%c1_46, %c0_47, %c0_48] : memref<2x256x256xf32, #tpu.memory_space<vmem>>, vector<1x256x256xf32>
    %65 = vector.shape_cast %64 : vector<1x256x256xf32> to vector<256x256xf32>
    %cst_49 = arith.constant dense<0.000000e+00> : vector<2x256xf32>
    %66 = tpu.matmul %63, %65, %cst_49 {dimension_numbers = #tpu.dot_dimension_numbers<[1], [0], [0], [1], [0, 0, 1, 1], [], []>} : vector<2x256xf32>, vector<256x256xf32>, vector<2x256xf32> -> vector<2x256xf32>
    %c1_50 = arith.constant 1 : index
    %c0_51 = arith.constant 0 : index
    %c0_52 = arith.constant 0 : index
    %67 = vector.load %arg7[%c1_50, %c0_51, %c0_52] : memref<2x1x256xf32, #tpu.memory_space<vmem>>, vector<1x1x256xf32>
    %68 = vector.shape_cast %67 : vector<1x1x256xf32> to vector<1x256xf32>
    %69 = vector.broadcast %68 : vector<1x256xf32> to vector<2x256xf32>
    %70 = arith.addf %66, %69 : vector<2x256xf32>
    %c0_53 = arith.constant 0 : index
    %c256 = arith.constant 256 : index
    %71 = vector.load %arg8[%c0_53, %c256] : memref<2x512xf32, #tpu.memory_space<vmem>>, vector<2x256xf32>
    tpu.vector_store %arg8[%c0_53, %c256], %70 {strides = array<i32>} : memref<2x512xf32, #tpu.memory_space<vmem>>, vector<2x256xf32>,
    return
  }
  func.func @transform_0(%arg0: i32) -> (i32, i32, i32) {
    %c0_i32 = arith.constant 0 : i32
    %c0_i32_0 = arith.constant 0 : i32
    %c0_i32_1 = arith.constant 0 : i32
    return %arg0, %c0_i32, %c0_i32_0 : i32, i32, i32
  }
  func.func @transform_1(%arg0: i32) -> (i32, i32, i32) {
    %c0_i32 = arith.constant 0 : i32
    %c0_i32_0 = arith.constant 0 : i32
    %c0_i32_1 = arith.constant 0 : i32
    return %arg0, %c0_i32, %c0_i32_0 : i32, i32, i32
  }
  func.func @transform_2(%arg0: i32) -> (i32, i32, i32) {
    %c0_i32 = arith.constant 0 : i32
    %c0_i32_0 = arith.constant 0 : i32
    %c0_i32_1 = arith.constant 0 : i32
    return %arg0, %c0_i32, %c0_i32_0 : i32, i32, i32
  }
  func.func @transform_3(%arg0: i32) -> (i32, i32, i32) {
    %c0_i32 = arith.constant 0 : i32
    %c0_i32_0 = arith.constant 0 : i32
    %c0_i32_1 = arith.constant 0 : i32
    return %arg0, %c0_i32, %c0_i32_0 : i32, i32, i32
  }
  func.func @transform_4(%arg0: i32) -> (i32, i32, i32) {
    %c0_i32 = arith.constant 0 : i32
    %c0_i32_0 = arith.constant 0 : i32
    %c0_i32_1 = arith.constant 0 : i32
    return %arg0, %c0_i32, %c0_i32_0 : i32, i32, i32
  }
  func.func @transform_5(%arg0: i32) -> (i32, i32, i32) {
    %c0_i32 = arith.constant 0 : i32
    %c0_i32_0 = arith.constant 0 : i32
    %c0_i32_1 = arith.constant 0 : i32
    return %arg0, %c0_i32, %c0_i32_0 : i32, i32, i32
  }
  func.func @transform_6(%arg0: i32) -> (i32, i32, i32) {
    %c0_i32 = arith.constant 0 : i32
    %c0_i32_0 = arith.constant 0 : i32
    %c0_i32_1 = arith.constant 0 : i32
    return %arg0, %c0_i32, %c0_i32_0 : i32, i32, i32
  }
  func.func @transform_7(%arg0: i32) -> (i32, i32) {
    %c0_i32 = arith.constant 0 : i32
    %c0_i32_0 = arith.constant 0 : i32
    return %c0_i32, %arg0 : i32, i32
  }
}

</mosaic_0001>

<llo_original>
// kernel: tpu_custom_call.1
$region0: #{tpu_custom_call.1}
  #allocation0 [shape = 'u32[]', space=smem, size = 0x4, offset = 0x4, fixed_abs, tag = 'smem constant byte address 0x4 - core index']
  #allocation1 [shape = 'u32[72,128]{1,0:T(1,128)}', space=vmem, size = 0x9000, scoped, tag = 'internal scratch']
  %s0 = inlined_call_operand.vmem [shape: f32[4,2,1], index: 0, kind: input, shape index: {}]
  %s1 = inlined_call_operand.vmem [shape: f32[4,1,64], index: 1, kind: input, shape index: {}]
  %s2 = inlined_call_operand.hbm [shape: f32[4,1,64], index: 2, kind: input, shape index: {}]
  %s3 = inlined_call_operand.hbm [shape: f32[4,64,256], index: 3, kind: input, shape index: {}]
  %s4 = inlined_call_operand.vmem [shape: f32[4,1,256], index: 4, kind: input, shape index: {}]
  %s5 = inlined_call_operand.hbm [shape: f32[4,256,256], index: 5, kind: input, shape index: {}]
  %s6 = inlined_call_operand.hbm [shape: f32[4,1,256], index: 6, kind: input, shape index: {}]
  %s7 = inlined_call_operand.hbm [shape: f32[2,1024], index: 7, kind: output, shape index: {}]
  %s8 = sld [smem:[#allocation0]]
  $region77: #{tpu_custom_call.1} parent=0
    _
  %s10 = ssub.s32 1, %s8
  %s11 = scalar_select 0, %s10, %s8
  $region1: #{tpu_custom_call.1} parent=0
    #allocation2 [shape = 'u8[2048]{0}', space=vmem, size = 0x800, scoped, tag = 'input window, operand 2']
    #allocation3 [shape = 's32[2]{0}', space=sflag, size = 0x8, scoped, tag = 'scoped memory for tpu_custom_call.1']
    #allocation4 [shape = 's32[2]{0}', space=sflag, size = 0x8, scoped, tag = 'scoped memory for tpu_custom_call.1']
    #allocation5 [shape = 'u8[262144]{0}', space=vmem, size = 0x40000, scoped, tag = 'input window, operand 3']
    #allocation6 [shape = 's32[2]{0}', space=sflag, size = 0x8, scoped, tag = 'scoped memory for tpu_custom_call.1']
    #allocation7 [shape = 'u8[1048576]{0}', space=vmem, size = 0x100000, scoped, tag = 'input window, operand 5']
    #allocation8 [shape = 'u8[4096]{0}', space=vmem, size = 0x1000, scoped, tag = 'input window, operand 6']
    #allocation9 [shape = 's32[2]{0}', space=sflag, size = 0x8, scoped, tag = 'scoped memory for tpu_custom_call.1']
    #allocation10 [shape = 'u8[8192]{0}', space=vmem, size = 0x2000, scoped, tag = 'output window, operand 0']
    %12 = vsyncpa [#allocation3], 0
    %s13 = scalar_lea.sflag [#allocation3], 1
    %14 = vsyncpa %s13, 0
    %15 = vsyncpa [#allocation6], 0
    %s16 = scalar_lea.sflag [#allocation6], 1
    %17 = vsyncpa %s16, 0
    %18 = vsyncpa [#allocation9], 0
    %s19 = scalar_lea.sflag [#allocation9], 1
    %20 = vsyncpa %s19, 0
    %21 = vsyncpa [#allocation4], 0
    %s22 = scalar_lea.sflag [#allocation4], 1
    %23 = vsyncpa %s22, 0
    loop: start=0, step=1, limit=4
    $region2: #{tpu_custom_call.1} parent=1 // loop_pre_header
      _
    $region3: #{tpu_custom_call.1} parent=1 // loop_header
      %s25 = sphi 0, %s29
      %p26 = scmp.ge.s32.totalorder %s25, 4
      %s35 = sphi 0, %s37
      %s38 = sphi 0, %s35
      %s39 = sphi 0, %s38
      %s55 = sphi 0, %s39
      %s61 = sphi 0, %s63
      %s64 = sphi 0, %s61
      %s65 = sphi 0, %s64
      %s81 = sphi 0, %s65
      %s87 = sphi 0, %s89
      %s90 = sphi 0, %s87
      %s91 = sphi 0, %s90
      %s107 = sphi 0, %s91
      %s113 = sphi 0, %s115
      %s116 = sphi 0, %s113
      %s117 = sphi 0, %s116
      %s133 = sphi 0, %s117
      %s139 = sphi 0, %s141
      %s142 = sphi 0, %s139
      %s143 = sphi 0, %s142
      %s159 = sphi 0, %s143
      %s165 = sphi 0, %s167
      %s168 = sphi 0, %s165
      %s169 = sphi 0, %s168
      %s185 = sphi 0, %s169
      %s191 = sphi 0, %s193
      %s194 = sphi 0, %s191
      %s195 = sphi 0, %s194
      %s211 = sphi 0, %s195
      %s217 = sphi 0, %s219
      %s220 = sphi 0, %s217
      %s221 = sphi 0, %s220
      %s237 = sphi 0, %s221
    $region4: #{tpu_custom_call.1} parent=1 // loop_header_branch
      %28 = sbr.rel (%p26) target = $region8
    $region5: #{tpu_custom_call.1} parent=1 // loop_body
      %s30 = ssub.s32 %s25, 1
      %s31 = ssub.s32 %s25, 2
      %s32 = sadd.s32 %s25, 1
      %s33 = ssub.s32 %s25, %s32
      %p34 = scmp.eq.s32.totalorder %s33, 0
      %s36 = sadd.s32 %s35, 1
      %s37 = scalar_select %p34, %s35, %s36
      %p40 = pneg %p34
      %p41 = scmp.eq.s32.totalorder %s25, 1
      %p42 = por %p40, %p41
      %p43 = scmp.ne.s32.totalorder %s35, %s38
      %p44 = scmp.eq.s32.totalorder %s25, 0
      %p45 = por %p43, %p44
      %p46 = scmp.ne.s32.totalorder %s35, %s38
      %p47 = scmp.eq.s32.totalorder %s30, 1
      %p48 = por %p46, %p47
      %p49 = scmp.ne.s32.totalorder %s38, %s39
      %p50 = scmp.eq.s32.totalorder %s30, 0
      %p51 = por %p49, %p50
      %p52 = scmp.ne.s32.totalorder %s38, %s39
      %p53 = scmp.eq.s32.totalorder %s31, 1
      %p54 = por %p52, %p53
      %p56 = scmp.ne.s32.totalorder %s39, %s55
      %p57 = scmp.eq.s32.totalorder %s31, 0
      %p58 = por %p56, %p57
      %s59 = ssub.s32 %s25, %s32
      %p60 = scmp.eq.s32.totalorder %s59, 0
      %s62 = sadd.s32 %s61, 1
      %s63 = scalar_select %p60, %s61, %s62
      %p66 = pneg %p60
      %p67 = scmp.eq.s32.totalorder %s25, 1
      %p68 = por %p66, %p67
      %p69 = scmp.ne.s32.totalorder %s61, %s64
      %p70 = scmp.eq.s32.totalorder %s25, 0
      %p71 = por %p69, %p70
      %p72 = scmp.ne.s32.totalorder %s61, %s64
      %p73 = scmp.eq.s32.totalorder %s30, 1
      %p74 = por %p72, %p73
      %p75 = scmp.ne.s32.totalorder %s64, %s65
      %p76 = scmp.eq.s32.totalorder %s30, 0
      %p77 = por %p75, %p76
      %p78 = scmp.ne.s32.totalorder %s64, %s65
      %p79 = scmp.eq.s32.totalorder %s31, 1
      %p80 = por %p78, %p79
      %p82 = scmp.ne.s32.totalorder %s65, %s81
      %p83 = scmp.eq.s32.totalorder %s31, 0
      %p84 = por %p82, %p83
      %s85 = ssub.s32 %s25, %s32
      %p86 = scmp.eq.s32.totalorder %s85, 0
      %s88 = sadd.s32 %s87, 1
      %s89 = scalar_select %p86, %s87, %s88
      %p92 = pneg %p86
      %p93 = scmp.eq.s32.totalorder %s25, 1
      %p94 = por %p92, %p93
      %p95 = scmp.ne.s32.totalorder %s87, %s90
      %p96 = scmp.eq.s32.totalorder %s25, 0
      %p97 = por %p95, %p96
      %p98 = scmp.ne.s32.totalorder %s87, %s90
      %p99 = scmp.eq.s32.totalorder %s30, 1
      %p100 = por %p98, %p99
      %p101 = scmp.ne.s32.totalorder %s90, %s91
      %p102 = scmp.eq.s32.totalorder %s30, 0
      %p103 = por %p101, %p102
      %p104 = scmp.ne.s32.totalorder %s90, %s91
      %p105 = scmp.eq.s32.totalorder %s31, 1
      %p106 = por %p104, %p105
      %p108 = scmp.ne.s32.totalorder %s91, %s107
      %p109 = scmp.eq.s32.totalorder %s31, 0
      %p110 = por %p108, %p109
      %s111 = ssub.s32 %s25, %s32
      %p112 = scmp.eq.s32.totalorder %s111, 0
      %s114 = sadd.s32 %s113, 1
      %s115 = scalar_select %p112, %s113, %s114
      %p118 = pneg %p112
      %p119 = scmp.eq.s32.totalorder %s25, 1
      %p120 = por %p118, %p119
      %p121 = scmp.ne.s32.totalorder %s113, %s116
      %p122 = scmp.eq.s32.totalorder %s25, 0
      %p123 = por %p121, %p122
      %p124 = scmp.ne.s32.totalorder %s113, %s116
      %p125 = scmp.eq.s32.totalorder %s30, 1
      %p126 = por %p124, %p125
      %p127 = scmp.ne.s32.totalorder %s116, %s117
      %p128 = scmp.eq.s32.totalorder %s30, 0
      %p129 = por %p127, %p128
      %p130 = scmp.ne.s32.totalorder %s116, %s117
      %p131 = scmp.eq.s32.totalorder %s31, 1
      %p132 = por %p130, %p131
      %p134 = scmp.ne.s32.totalorder %s117, %s133
      %p135 = scmp.eq.s32.totalorder %s31, 0
      %p136 = por %p134, %p135
      %s137 = ssub.s32 %s25, %s32
      %p138 = scmp.eq.s32.totalorder %s137, 0
      %s140 = sadd.s32 %s139, 1
      %s141 = scalar_select %p138, %s139, %s140
      %p144 = pneg %p138
      %p145 = scmp.eq.s32.totalorder %s25, 1
      %p146 = por %p144, %p145
      %p147 = scmp.ne.s32.totalorder %s139, %s142
      %p148 = scmp.eq.s32.totalorder %s25, 0
      %p149 = por %p147, %p148
      %p150 = scmp.ne.s32.totalorder %s139, %s142
      %p151 = scmp.eq.s32.totalorder %s30, 1
      %p152 = por %p150, %p151
      %p153 = scmp.ne.s32.totalorder %s142, %s143
      %p154 = scmp.eq.s32.totalorder %s30, 0
      %p155 = por %p153, %p154
      %p156 = scmp.ne.s32.totalorder %s142, %s143
      %p157 = scmp.eq.s32.totalorder %s31, 1
      %p158 = por %p156, %p157
      %p160 = scmp.ne.s32.totalorder %s143, %s159
      %p161 = scmp.eq.s32.totalorder %s31, 0
      %p162 = por %p160, %p161
      %s163 = ssub.s32 %s25, %s32
      %p164 = scmp.eq.s32.totalorder %s163, 0
      %s166 = sadd.s32 %s165, 1
      %s167 = scalar_select %p164, %s165, %s166
      %p170 = pneg %p164
      %p171 = scmp.eq.s32.totalorder %s25, 1
      %p172 = por %p170, %p171
      %p173 = scmp.ne.s32.totalorder %s165, %s168
      %p174 = scmp.eq.s32.totalorder %s25, 0
      %p175 = por %p173, %p174
      %p176 = scmp.ne.s32.totalorder %s165, %s168
      %p177 = scmp.eq.s32.totalorder %s30, 1
      %p178 = por %p176, %p177
      %p179 = scmp.ne.s32.totalorder %s168, %s169
      %p180 = scmp.eq.s32.totalorder %s30, 0
      %p181 = por %p179, %p180
      %p182 = scmp.ne.s32.totalorder %s168, %s169
      %p183 = scmp.eq.s32.totalorder %s31, 1
      %p184 = por %p182, %p183
      %p186 = scmp.ne.s32.totalorder %s169, %s185
      %p187 = scmp.eq.s32.totalorder %s31, 0
      %p188 = por %p186, %p187
      %s189 = ssub.s32 %s25, %s32
      %p190 = scmp.eq.s32.totalorder %s189, 0
      %s192 = sadd.s32 %s191, 1
      %s193 = scalar_select %p190, %s191, %s192
      %p196 = pneg %p190
      %p197 = scmp.eq.s32.totalorder %s25, 1
      %p198 = por %p196, %p197
      %p199 = scmp.ne.s32.totalorder %s191, %s194
      %p200 = scmp.eq.s32.totalorder %s25, 0
      %p201 = por %p199, %p200
      %p202 = scmp.ne.s32.totalorder %s191, %s194
      %p203 = scmp.eq.s32.totalorder %s30, 1
      %p204 = por %p202, %p203
      %p205 = scmp.ne.s32.totalorder %s194, %s195
      %p206 = scmp.eq.s32.totalorder %s30, 0
      %p207 = por %p205, %p206
      %p208 = scmp.ne.s32.totalorder %s194, %s195
      %p209 = scmp.eq.s32.totalorder %s31, 1
      %p210 = por %p208, %p209
      %p212 = scmp.ne.s32.totalorder %s195, %s211
      %p213 = scmp.eq.s32.totalorder %s31, 0
      %p214 = por %p212, %p213
      %s215 = ssub.s32 %s25, %s32
      %p216 = scmp.eq.s32.totalorder %s215, 0
      %s218 = sadd.s32 %s217, 1
      %s219 = scalar_select %p216, %s217, %s218
      %p222 = pneg %p216
      %p223 = scmp.eq.s32.totalorder %s25, 1
      %p224 = por %p222, %p223
      %p225 = scmp.ne.s32.totalorder %s217, %s220
      %p226 = scmp.eq.s32.totalorder %s25, 0
      %p227 = por %p225, %p226
      %p228 = scmp.ne.s32.totalorder %s217, %s220
      %p229 = scmp.eq.s32.totalorder %s30, 1
      %p230 = por %p228, %p229
      %p231 = scmp.ne.s32.totalorder %s220, %s221
      %p232 = scmp.eq.s32.totalorder %s30, 0
      %p233 = por %p231, %p232
      %p234 = scmp.ne.s32.totalorder %s220, %s221
      %p235 = scmp.eq.s32.totalorder %s31, 1
      %p236 = por %p234, %p235
      %p238 = scmp.ne.s32.totalorder %s221, %s237
      %p239 = scmp.eq.s32.totalorder %s31, 0
      %p240 = por %p238, %p239
      %p241 = scmp.le.s32.totalorder 1, %s25
      %p242 = scmp.lt.s32.totalorder %s25, 3
      %p243 = pnand %p241, %p242
      %p244 = pneg %p243
      // Predicated region
      $region9: #{tpu_custom_call.1} parent=5 // pred_check
        _
      $region10: #{tpu_custom_call.1} parent=5 // pred_check_branch
        %246 = sbr.rel (%p243) target = $region12
      $region11: #{tpu_custom_call.1} parent=5 // pred_region
        %s247 = ssub.s32 %s25, 1
      $region12: #{tpu_custom_call.1} parent=5 // pred_fallthru
        _
      %p248 = scmp.lt.s32.totalorder %s25, 2
      // Predicated region
      $region13: #{tpu_custom_call.1} parent=5 // pred_check
        %p249 = pneg %p248
      $region14: #{tpu_custom_call.1} parent=5 // pred_check_branch
        %251 = sbr.rel (%p249) target = $region16
      $region15: #{tpu_custom_call.1} parent=5 // pred_region
        // Predicated region
        $region17: #{tpu_custom_call.1} parent=15 // pred_check
          %p252 = pneg %p45
        $region18: #{tpu_custom_call.1} parent=15 // pred_check_branch
          %254 = sbr.rel (%p252) target = $region20
        $region19: #{tpu_custom_call.1} parent=15 // pred_region
          %s255 = smul.u32 2, %s25
          %p256 = scmp.lt.s32.totalorder %s255, 3
          %s257 = scalar_select %p256, %s255, 3
          %s258 = smul.addr %s257, 2
          %s259 = scalar_lea.vmem %s0, %s258
          %s260 = smul.u32 2, %s25
        $region20: #{tpu_custom_call.1} parent=15 // pred_fallthru
          _
        // Predicated region
        $region21: #{tpu_custom_call.1} parent=15 // pred_check
          %p261 = pneg %p71
        $region22: #{tpu_custom_call.1} parent=15 // pred_check_branch
          %263 = sbr.rel (%p261) target = $region24
        $region23: #{tpu_custom_call.1} parent=15 // pred_region
          %s264 = smul.u32 2, %s25
          %p265 = scmp.lt.s32.totalorder %s264, 3
          %s266 = scalar_select %p265, %s264, 3
          %s267 = scalar_lea.vmem %s1, %s266
          %s268 = smul.u32 2, %s25
        $region24: #{tpu_custom_call.1} parent=15 // pred_fallthru
          _
        // Predicated region
        $region25: #{tpu_custom_call.1} parent=15 // pred_check
          %p269 = pneg %p97
        $region26: #{tpu_custom_call.1} parent=15 // pred_check_branch
          %271 = sbr.rel (%p269) target = $region28
        $region27: #{tpu_custom_call.1} parent=15 // pred_region
          %s272 = sand.u32 %s87, 1
          %s273 = scalar_lea.sflag [#allocation3], %s272
          %s274 = sand.u32 %s87, 1
          %s275 = smul.addr %s274, 2
          %s276 = scalar_lea.vmem [#allocation2], %s275
          %s277 = smul.u32 2, %s25
          %279 = vsyncadd %s273, 0
          %s280 = scalar_lea.hbm %s2, %s277
          %s281 = sshll.u32 %s280, 4
          %s282 = int_to_ptr.hbm [resolvable:$true] %s281
          %s283 = sshll.u32 %s276, 4
          %s284 = int_to_ptr.vmem [resolvable:$true] %s283
          %289 = dma.hbm_to_vmem [thread:$0]  %s282, 32, %s284, %s273, 16, 16, 1
        $region28: #{tpu_custom_call.1} parent=15 // pred_fallthru
          _
        // Predicated region
        $region29: #{tpu_custom_call.1} parent=15 // pred_check
          %p290 = pneg %p123
        $region30: #{tpu_custom_call.1} parent=15 // pred_check_branch
          %292 = sbr.rel (%p290) target = $region32
        $region31: #{tpu_custom_call.1} parent=15 // pred_region
          %s293 = sand.u32 %s25, 1
          %s294 = scalar_lea.sflag [#allocation6], %s293
          %s295 = sand.u32 %s113, 1
          %s296 = smul.addr %s295, 256
          %s297 = scalar_lea.vmem [#allocation5], %s296
          %s298 = smul.u32 2, %s25
          %300 = vsyncadd %s294, 0
          %s301 = smul.addr %s298, 16
          %s302 = smul.addr %s301, 8
          %s303 = scalar_lea.hbm %s3, %s302
          %s304 = sshll.u32 %s303, 4
          %s305 = int_to_ptr.hbm [resolvable:$true] %s304
          %s306 = sshll.u32 %s297, 4
          %s307 = int_to_ptr.vmem [resolvable:$true] %s306
          %312 = dma.hbm_to_vmem [thread:$0]  %s305, 4096, %s307, %s294, 256, 256, 16
        $region32: #{tpu_custom_call.1} parent=15 // pred_fallthru
          _
        // Predicated region
        $region33: #{tpu_custom_call.1} parent=15 // pred_check
          %p313 = pneg %p149
        $region34: #{tpu_custom_call.1} parent=15 // pred_check_branch
          %315 = sbr.rel (%p313) target = $region36
        $region35: #{tpu_custom_call.1} parent=15 // pred_region
          %s316 = smul.u32 2, %s25
          %p317 = scmp.lt.s32.totalorder %s316, 3
          %s318 = scalar_select %p317, %s316, 3
          %s319 = smul.addr %s318, 2
          %s320 = scalar_lea.vmem %s4, %s319
          %s321 = smul.u32 2, %s25
        $region36: #{tpu_custom_call.1} parent=15 // pred_fallthru
          _
        // Predicated region
        $region37: #{tpu_custom_call.1} parent=15 // pred_check
          %p322 = pneg %p175
        $region38: #{tpu_custom_call.1} parent=15 // pred_check_branch
          %324 = sbr.rel (%p322) target = $region40
        $region39: #{tpu_custom_call.1} parent=15 // pred_region
          %s325 = sand.u32 %s25, 1
          %s326 = scalar_lea.sflag [#allocation6], %s325
          %s327 = sand.u32 %s165, 1
          %s328 = smul.addr %s327, 1024
          %s329 = scalar_lea.vmem [#allocation7], %s328
          %s330 = smul.u32 2, %s25
          %332 = vsyncadd %s326, 0
          %s333 = smul.addr %s330, 64
          %s334 = smul.addr %s333, 8
          %s335 = scalar_lea.hbm %s5, %s334
          %s336 = sshll.u32 %s335, 4
          %s337 = int_to_ptr.hbm [resolvable:$true] %s336
          %s338 = sshll.u32 %s329, 4
          %s339 = int_to_ptr.vmem [resolvable:$true] %s338
          %344 = dma.hbm_to_vmem [thread:$0]  %s337, 16384, %s339, %s326, 256, 256, 16
        $region40: #{tpu_custom_call.1} parent=15 // pred_fallthru
          _
        // Predicated region
        $region41: #{tpu_custom_call.1} parent=15 // pred_check
          %p345 = pneg %p201
        $region42: #{tpu_custom_call.1} parent=15 // pred_check_branch
          %347 = sbr.rel (%p345) target = $region44
        $region43: #{tpu_custom_call.1} parent=15 // pred_region
          %s348 = sand.u32 %s191, 1
          %s349 = scalar_lea.sflag [#allocation9], %s348
          %s350 = sand.u32 %s191, 1
          %s351 = smul.addr %s350, 4
          %s352 = scalar_lea.vmem [#allocation8], %s351
          %s353 = smul.u32 2, %s25
          %355 = vsyncadd %s349, 0
          %s356 = smul.addr %s353, 2
          %s357 = scalar_lea.hbm %s6, %s356
          %s358 = sshll.u32 %s357, 4
          %s359 = int_to_ptr.hbm [resolvable:$true] %s358
          %s360 = sshll.u32 %s352, 4
          %s361 = int_to_ptr.vmem [resolvable:$true] %s360
          %366 = dma.hbm_to_vmem [thread:$0]  %s359, 64, %s361, %s349, 32, 32, 2
        $region44: #{tpu_custom_call.1} parent=15 // pred_fallthru
          _
      $region16: #{tpu_custom_call.1} parent=5 // pred_fallthru
        _
      %p367 = scmp.le.s32.totalorder 1, %s25
      %p368 = scmp.lt.s32.totalorder %s25, 3
      %p369 = pnand %p367, %p368
      %p370 = pneg %p369
      // Predicated region
      $region45: #{tpu_custom_call.1} parent=5 // pred_check
        _
      $region46: #{tpu_custom_call.1} parent=5 // pred_check_branch
        %372 = sbr.rel (%p369) target = $region48
      $region47: #{tpu_custom_call.1} parent=5 // pred_region
        %s373 = ssub.s32 %s25, 1
        %s374 = sand.u32 %s90, 1
        %s375 = scalar_lea.sflag [#allocation3], %s374
        %s376 = sand.u32 %s90, 1
        %s377 = smul.addr %s376, 2
        %s378 = scalar_lea.vmem [#allocation2], %s377
        // Predicated region
        $region49: #{tpu_custom_call.1} parent=47 // pred_check
          %p379 = pneg %p103
        $region50: #{tpu_custom_call.1} parent=47 // pred_check_branch
          %381 = sbr.rel (%p379) target = $region52
        $region51: #{tpu_custom_call.1} parent=47 // pred_region
          %383 = dma.done %s375, 32
        $region52: #{tpu_custom_call.1} parent=47 // pred_fallthru
          _
        %s384 = sand.u32 %s30, 1
        %s385 = scalar_lea.sflag [#allocation6], %s384
        %s386 = sand.u32 %s116, 1
        %s387 = smul.addr %s386, 256
        %s388 = scalar_lea.vmem [#allocation5], %s387
        // Predicated region
        $region53: #{tpu_custom_call.1} parent=47 // pred_check
          %p389 = pneg %p129
        $region54: #{tpu_custom_call.1} parent=47 // pred_check_branch
          %391 = sbr.rel (%p389) target = $region56
        $region55: #{tpu_custom_call.1} parent=47 // pred_region
          %393 = dma.done %s385, 4096
        $region56: #{tpu_custom_call.1} parent=47 // pred_fallthru
          _
        %s394 = sand.u32 %s30, 1
        %s395 = scalar_lea.sflag [#allocation6], %s394
        %s396 = sand.u32 %s168, 1
        %s397 = smul.addr %s396, 1024
        %s398 = scalar_lea.vmem [#allocation7], %s397
        // Predicated region
        $region57: #{tpu_custom_call.1} parent=47 // pred_check
          %p399 = pneg %p181
        $region58: #{tpu_custom_call.1} parent=47 // pred_check_branch
          %401 = sbr.rel (%p399) target = $region60
        $region59: #{tpu_custom_call.1} parent=47 // pred_region
          %403 = dma.done %s395, 16384
        $region60: #{tpu_custom_call.1} parent=47 // pred_fallthru
          _
        %s404 = sand.u32 %s194, 1
        %s405 = scalar_lea.sflag [#allocation9], %s404
        %s406 = sand.u32 %s194, 1
        %s407 = smul.addr %s406, 4
        %s408 = scalar_lea.vmem [#allocation8], %s407
        // Predicated region
        $region61: #{tpu_custom_call.1} parent=47 // pred_check
          %p409 = pneg %p207
        $region62: #{tpu_custom_call.1} parent=47 // pred_check_branch
          %411 = sbr.rel (%p409) target = $region64
        $region63: #{tpu_custom_call.1} parent=47 // pred_region
          %413 = dma.done %s405, 64
        $region64: #{tpu_custom_call.1} parent=47 // pred_fallthru
          _
        %s414 = smul.u32 2, %s30
        %p415 = scmp.lt.s32.totalorder %s414, 3
        %s416 = scalar_select %p415, %s414, 3
        %s417 = smul.addr %s416, 2
        %s418 = scalar_lea.vmem %s0, %s417
        %p419 = pneg %p51
        %p420 = pneg %p48
        %s421 = smul.u32 2, %s30
        %p422 = scmp.lt.s32.totalorder %s421, 3
        %s423 = scalar_select %p422, %s421, 3
        %s424 = scalar_lea.vmem %s1, %s423
        %p425 = pneg %p77
        %p426 = pneg %p74
        %s427 = sand.u32 %s90, 1
        %s428 = scalar_lea.sflag [#allocation3], %s427
        %s429 = sand.u32 %s90, 1
        %s430 = smul.addr %s429, 2
        %s431 = scalar_lea.vmem [#allocation2], %s430
        %p432 = pneg %p103
        %p433 = pneg %p100
        %s434 = sand.u32 %s30, 1
        %s435 = scalar_lea.sflag [#allocation6], %s434
        %s436 = sand.u32 %s116, 1
        %s437 = smul.addr %s436, 256
        %s438 = scalar_lea.vmem [#allocation5], %s437
        %p439 = pneg %p129
        %p440 = pneg %p126
        %s441 = smul.u32 2, %s30
        %p442 = scmp.lt.s32.totalorder %s441, 3
        %s443 = scalar_select %p442, %s441, 3
        %s444 = smul.addr %s443, 2
        %s445 = scalar_lea.vmem %s4, %s444
        %p446 = pneg %p155
        %p447 = pneg %p152
        %s448 = sand.u32 %s30, 1
        %s449 = scalar_lea.sflag [#allocation6], %s448
        %s450 = sand.u32 %s168, 1
        %s451 = smul.addr %s450, 1024
        %s452 = scalar_lea.vmem [#allocation7], %s451
        %p453 = pneg %p181
        %p454 = pneg %p178
        %s455 = sand.u32 %s194, 1
        %s456 = scalar_lea.sflag [#allocation9], %s455
        %s457 = sand.u32 %s194, 1
        %s458 = smul.addr %s457, 4
        %s459 = scalar_lea.vmem [#allocation8], %s458
        %p460 = pneg %p207
        %p461 = pneg %p204
        %p462 = pneg %p233
        %p463 = pneg %p230
        %s464 = sand.u32 %s220, 1
        %s465 = scalar_lea.sflag [#allocation4], %s464
        %s466 = sand.u32 %s220, 1
        %s467 = smul.addr %s466, 8
        %s468 = scalar_lea.vmem [#allocation10], %s467
        %s469 = smul.u32 2, %s30
        %p470 = scmp.lt.s32.totalorder %s469, 3
        %s471 = scalar_select %p470, %s469, 3
        %s472 = smul.addr %s471, 2
        %s473 = scalar_lea.vmem %s0, %s472
        %s474 = smul.u32 2, %s30
        %s475 = smul.u32 2, %s30
        %p476 = scmp.lt.s32.totalorder %s475, 3
        %s477 = scalar_select %p476, %s475, 3
        %s478 = scalar_lea.vmem %s1, %s477
        %s479 = smul.u32 2, %s30
        %s480 = smul.u32 2, %s30
        %s481 = smul.u32 2, %s30
        %s482 = smul.u32 2, %s30
        %p483 = scmp.lt.s32.totalorder %s482, 3
        %s484 = scalar_select %p483, %s482, 3
        %s485 = smul.addr %s484, 2
        %s486 = scalar_lea.vmem %s4, %s485
        %s487 = smul.u32 2, %s30
        %s488 = smul.u32 2, %s30
        %s489 = smul.u32 2, %s30
        %s490 = smul.u32 4, %s30
        %v491 = vld [vmem:[%s473] sm:$0x3]
        %v492 = vld [vmem:[%s478] sm:$0x1]
        %494 = vset.pattern.permute.xlu0 0
        %495 = vperm.xlu0 %494, %v491
        %v496 = vpop.permute.xlu0 %495
        %v499 = vperm.slane %v492, 0
        %v501 = vmul.f32 %v496, %v499
        %v502 = vld [vmem:[%s378] sm:$0x1]
        %v504 = vperm.slane %v502, 0
        %v506 = vadd.f32 %v501, %v504
        %vm507 = vcmp.ge.f32.partialorder %v506, 0.0
        %v508 = vmul.f32 %v506, 0.2
        %v509 = vsel %vm507, %v506, %v508
        %v510 = vld [vmem:[%s388] sm:$0xff]
        %v511 = vld [vmem:[%s388 + $0x8] sm:$0xff]
        %v512 = vld [vmem:[%s388 + $0x10] sm:$0xff]
        %v513 = vld [vmem:[%s388 + $0x18] sm:$0xff]
        %v514 = vld [vmem:[%s388 + $0x20] sm:$0xff]
        %v515 = vld [vmem:[%s388 + $0x28] sm:$0xff]
        %v516 = vld [vmem:[%s388 + $0x30] sm:$0xff]
        %v517 = vld [vmem:[%s388 + $0x38] sm:$0xff]
        %v518 = vld [vmem:[%s388 + $0x40] sm:$0xff]
        %v519 = vld [vmem:[%s388 + $0x48] sm:$0xff]
        %v520 = vld [vmem:[%s388 + $0x50] sm:$0xff]
        %v521 = vld [vmem:[%s388 + $0x58] sm:$0xff]
        %v522 = vld [vmem:[%s388 + $0x60] sm:$0xff]
        %v523 = vld [vmem:[%s388 + $0x68] sm:$0xff]
        %v524 = vld [vmem:[%s388 + $0x70] sm:$0xff]
        %v525 = vld [vmem:[%s388 + $0x78] sm:$0xff]
        %v526 = vld [vmem:[%s486] sm:$0x3]
        %v528 = vperm.slane %v526, 0
        %v529 = vperm.slane %v526, 1
        %vm532 = vcmask 523264
        %v534 = vsel %vm532, %v509, 0
        %536 = vmatpush.msra.mxu0 0.0
        %537 = vmatpush.msra.mxu0 0.0
        %538 = vmatpush.msra.mxu0 0.0
        %539 = vmatpush.msra.mxu0 0.0
        %540 = vmatpush.msra.mxu0 0.0
        %541 = vmatpush.msra.mxu0 0.0
        %542 = vmatpush.msra.mxu0 0.0
        %543 = vmatpush.msra.mxu0 0.0
        %544 = vmatpush.msra.mxu0 %v524
        %545 = vmatpush.msra.mxu0 %v522
        %546 = vmatpush.msra.mxu0 %v520
        %547 = vmatpush.msra.mxu0 %v518
        %548 = vmatpush.msra.mxu0 %v516
        %549 = vmatpush.msra.mxu0 %v514
        %550 = vmatpush.msra.mxu0 %v512
        %551 = vmatpush.msra.mxu0 %v510
        %552 = vmatmul.f32.gmra.mxu0 %v534
        %v553 = vpop.f32.mrf.mxu0
        %v554 = vadd.f32 %v528, %v553
        %555 = vdwg.mxu0
        %556 = vmatpush.msra.mxu0 0.0
        %557 = vmatpush.msra.mxu0 0.0
        %558 = vmatpush.msra.mxu0 0.0
        %559 = vmatpush.msra.mxu0 0.0
        %560 = vmatpush.msra.mxu0 0.0
        %561 = vmatpush.msra.mxu0 0.0
        %562 = vmatpush.msra.mxu0 0.0
        %563 = vmatpush.msra.mxu0 0.0
        %564 = vmatpush.msra.mxu0 %v525
        %565 = vmatpush.msra.mxu0 %v523
        %566 = vmatpush.msra.mxu0 %v521
        %567 = vmatpush.msra.mxu0 %v519
        %568 = vmatpush.msra.mxu0 %v517
        %569 = vmatpush.msra.mxu0 %v515
        %570 = vmatpush.msra.mxu0 %v513
        %571 = vmatpush.msra.mxu0 %v511
        %572 = vmatmul.f32.gmra.mxu0 %v534
        %v573 = vpop.f32.mrf.mxu0
        %v574 = vadd.f32 %v529, %v573
        %575 = vdwg.mxu0
        %vm576 = vcmp.ge.f32.partialorder %v554, 0.0
        %vm577 = vcmp.ge.f32.partialorder %v574, 0.0
        %v578 = vmul.f32 %v554, 0.2
        %v579 = vmul.f32 %v574, 0.2
        %v580 = vsel %vm576, %v554, %v578
        %v581 = vsel %vm577, %v574, %v579
        %v582 = vld [vmem:[%s398] sm:$0xff]
        %v583 = vld [vmem:[%s398 + $0x8] sm:$0xff]
        %v584 = vld [vmem:[%s398 + $0x10] sm:$0xff]
        %v585 = vld [vmem:[%s398 + $0x18] sm:$0xff]
        %v586 = vld [vmem:[%s398 + $0x20] sm:$0xff]
        %v587 = vld [vmem:[%s398 + $0x28] sm:$0xff]
        %v588 = vld [vmem:[%s398 + $0x30] sm:$0xff]
        %v589 = vld [vmem:[%s398 + $0x38] sm:$0xff]
        %v590 = vld [vmem:[%s398 + $0x40] sm:$0xff]
        %v591 = vld [vmem:[%s398 + $0x48] sm:$0xff]
        %v592 = vld [vmem:[%s398 + $0x50] sm:$0xff]
        %v593 = vld [vmem:[%s398 + $0x58] sm:$0xff]
        %v594 = vld [vmem:[%s398 + $0x60] sm:$0xff]
        %v595 = vld [vmem:[%s398 + $0x68] sm:$0xff]
        %v596 = vld [vmem:[%s398 + $0x70] sm:$0xff]
        %v597 = vld [vmem:[%s398 + $0x78] sm:$0xff]
        %v598 = vld [vmem:[%s398 + $0x80] sm:$0xff]
        %v599 = vld [vmem:[%s398 + $0x88] sm:$0xff]
        %v600 = vld [vmem:[%s398 + $0x90] sm:$0xff]
        %v601 = vld [vmem:[%s398 + $0x98] sm:$0xff]
        %v602 = vld [vmem:[%s398 + $0xa0] sm:$0xff]
        %v603 = vld [vmem:[%s398 + $0xa8] sm:$0xff]
        %v604 = vld [vmem:[%s398 + $0xb0] sm:$0xff]
        %v605 = vld [vmem:[%s398 + $0xb8] sm:$0xff]
        %v606 = vld [vmem:[%s398 + $0xc0] sm:$0xff]
        %v607 = vld [vmem:[%s398 + $0xc8] sm:$0xff]
        %v608 = vld [vmem:[%s398 + $0xd0] sm:$0xff]
        %v609 = vld [vmem:[%s398 + $0xd8] sm:$0xff]
        %v610 = vld [vmem:[%s398 + $0xe0] sm:$0xff]
        %v611 = vld [vmem:[%s398 + $0xe8] sm:$0xff]
        %v612 = vld [vmem:[%s398 + $0xf0] sm:$0xff]
        %v613 = vld [vmem:[%s398 + $0xf8] sm:$0xff]
        %v614 = vld [vmem:[%s398 + $0x100] sm:$0xff]
        %v615 = vld [vmem:[%s398 + $0x108] sm:$0xff]
        %v616 = vld [vmem:[%s398 + $0x110] sm:$0xff]
        %v617 = vld [vmem:[%s398 + $0x118] sm:$0xff]
        %v618 = vld [vmem:[%s398 + $0x120] sm:$0xff]
        %v619 = vld [vmem:[%s398 + $0x128] sm:$0xff]
        %v620 = vld [vmem:[%s398 + $0x130] sm:$0xff]
        %v621 = vld [vmem:[%s398 + $0x138] sm:$0xff]
        %v622 = vld [vmem:[%s398 + $0x140] sm:$0xff]
        %v623 = vld [vmem:[%s398 + $0x148] sm:$0xff]
        %v624 = vld [vmem:[%s398 + $0x150] sm:$0xff]
        %v625 = vld [vmem:[%s398 + $0x158] sm:$0xff]
        %v626 = vld [vmem:[%s398 + $0x160] sm:$0xff]
        %v627 = vld [vmem:[%s398 + $0x168] sm:$0xff]
        %v628 = vld [vmem:[%s398 + $0x170] sm:$0xff]
        %v629 = vld [vmem:[%s398 + $0x178] sm:$0xff]
        %v630 = vld [vmem:[%s398 + $0x180] sm:$0xff]
        %v631 = vld [vmem:[%s398 + $0x188] sm:$0xff]
        %v632 = vld [vmem:[%s398 + $0x190] sm:$0xff]
        %v633 = vld [vmem:[%s398 + $0x198] sm:$0xff]
        %v634 = vld [vmem:[%s398 + $0x1a0] sm:$0xff]
        %v635 = vld [vmem:[%s398 + $0x1a8] sm:$0xff]
        %v636 = vld [vmem:[%s398 + $0x1b0] sm:$0xff]
        %v637 = vld [vmem:[%s398 + $0x1b8] sm:$0xff]
        %v638 = vld [vmem:[%s398 + $0x1c0] sm:$0xff]
        %v639 = vld [vmem:[%s398 + $0x1c8] sm:$0xff]
        %v640 = vld [vmem:[%s398 + $0x1d0] sm:$0xff]
        %v641 = vld [vmem:[%s398 + $0x1d8] sm:$0xff]
        %v642 = vld [vmem:[%s398 + $0x1e0] sm:$0xff]
        %v643 = vld [vmem:[%s398 + $0x1e8] sm:$0xff]
        %v644 = vld [vmem:[%s398 + $0x1f0] sm:$0xff]
        %v645 = vld [vmem:[%s398 + $0x1f8] sm:$0xff]
        %v646 = vld [vmem:[%s408] sm:$0x3]
        %v648 = vperm.slane %v646, 0
        %v649 = vperm.slane %v646, 1
        %652 = vmatpush.msra.mxu0 %v612
        %653 = vmatpush.msra.mxu0 %v610
        %654 = vmatpush.msra.mxu0 %v608
        %655 = vmatpush.msra.mxu0 %v606
        %656 = vmatpush.msra.mxu0 %v604
        %657 = vmatpush.msra.mxu0 %v602
        %658 = vmatpush.msra.mxu0 %v600
        %659 = vmatpush.msra.mxu0 %v598
        %660 = vmatpush.msra.mxu0 %v596
        %661 = vmatpush.msra.mxu0 %v594
        %662 = vmatpush.msra.mxu0 %v592
        %663 = vmatpush.msra.mxu0 %v590
        %664 = vmatpush.msra.mxu0 %v588
        %665 = vmatpush.msra.mxu0 %v586
        %666 = vmatpush.msra.mxu0 %v584
        %667 = vmatpush.msra.mxu0 %v582
        %668 = vmatmul.f32.gmra.mxu0 %v580
        %v669 = vpop.f32.mrf.mxu0
        %v670 = vadd.f32 %v648, %v669
        %671 = vdwg.mxu0
        %672 = vmatpush.msra.mxu0 %v644
        %673 = vmatpush.msra.mxu0 %v642
        %674 = vmatpush.msra.mxu0 %v640
        %675 = vmatpush.msra.mxu0 %v638
        %676 = vmatpush.msra.mxu0 %v636
        %677 = vmatpush.msra.mxu0 %v634
        %678 = vmatpush.msra.mxu0 %v632
        %679 = vmatpush.msra.mxu0 %v630
        %680 = vmatpush.msra.mxu0 %v628
        %681 = vmatpush.msra.mxu0 %v626
        %682 = vmatpush.msra.mxu0 %v624
        %683 = vmatpush.msra.mxu0 %v622
        %684 = vmatpush.msra.mxu0 %v620
        %685 = vmatpush.msra.mxu0 %v618
        %686 = vmatpush.msra.mxu0 %v616
        %687 = vmatpush.msra.mxu0 %v614
        %688 = vmatmul.f32.gmra.mxu0 %v581
        %v689 = vpop.f32.mrf.mxu0
        %v690 = vadd.f32 %v670, %v689
        %691 = vdwg.mxu0
        %692 = vmatpush.msra.mxu0 %v613
        %693 = vmatpush.msra.mxu0 %v611
        %694 = vmatpush.msra.mxu0 %v609
        %695 = vmatpush.msra.mxu0 %v607
        %696 = vmatpush.msra.mxu0 %v605
        %697 = vmatpush.msra.mxu0 %v603
        %698 = vmatpush.msra.mxu0 %v601
        %699 = vmatpush.msra.mxu0 %v599
        %700 = vmatpush.msra.mxu0 %v597
        %701 = vmatpush.msra.mxu0 %v595
        %702 = vmatpush.msra.mxu0 %v593
        %703 = vmatpush.msra.mxu0 %v591
        %704 = vmatpush.msra.mxu0 %v589
        %705 = vmatpush.msra.mxu0 %v587
        %706 = vmatpush.msra.mxu0 %v585
        %707 = vmatpush.msra.mxu0 %v583
        %708 = vmatmul.f32.gmra.mxu0 %v580
        %v709 = vpop.f32.mrf.mxu0
        %v710 = vadd.f32 %v649, %v709
        %711 = vdwg.mxu0
        %712 = vmatpush.msra.mxu0 %v645
        %713 = vmatpush.msra.mxu0 %v643
        %714 = vmatpush.msra.mxu0 %v641
        %715 = vmatpush.msra.mxu0 %v639
        %716 = vmatpush.msra.mxu0 %v637
        %717 = vmatpush.msra.mxu0 %v635
        %718 = vmatpush.msra.mxu0 %v633
        %719 = vmatpush.msra.mxu0 %v631
        %720 = vmatpush.msra.mxu0 %v629
        %721 = vmatpush.msra.mxu0 %v627
        %722 = vmatpush.msra.mxu0 %v625
        %723 = vmatpush.msra.mxu0 %v623
        %724 = vmatpush.msra.mxu0 %v621
        %725 = vmatpush.msra.mxu0 %v619
        %726 = vmatpush.msra.mxu0 %v617
        %727 = vmatpush.msra.mxu0 %v615
        %728 = vmatmul.f32.gmra.mxu0 %v581
        %v729 = vpop.f32.mrf.mxu0
        %v730 = vadd.f32 %v710, %v729
        %731 = vdwg.mxu0
        %v734 = vrot.slane %v730, 6
        %vm735 = vcmask 1041408
        %v736 = vsel %vm735, %v690, %v734
        %738 = vst [vmem:[%s468] sm:$0xf] %v736
        %s739 = scalar_lea.vmem %s473, 2
        %v740 = vld [vmem:[%s739] sm:$0x3]
        %s741 = scalar_lea.vmem %s478, 1
        %v742 = vld [vmem:[%s741] sm:$0x1]
        %744 = vset.pattern.permute.xlu0 0
        %745 = vperm.xlu0 %744, %v740
        %v746 = vpop.permute.xlu0 %745
        %v749 = vperm.slane %v742, 0
        %v751 = vmul.f32 %v746, %v749
        %s752 = scalar_lea.vmem %s378, 1 [#allocation2]
        %v753 = vld [vmem:[%s752] sm:$0x1]
        %v755 = vperm.slane %v753, 0
        %v757 = vadd.f32 %v751, %v755
        %vm758 = vcmp.ge.f32.partialorder %v757, 0.0
        %v759 = vmul.f32 %v757, 0.2
        %v760 = vsel %vm758, %v757, %v759
        %s761 = scalar_lea.vmem %s388, 128 [#allocation5]
        %v762 = vld [vmem:[%s761] sm:$0xff]
        %v763 = vld [vmem:[%s761 + $0x8] sm:$0xff]
        %v764 = vld [vmem:[%s761 + $0x10] sm:$0xff]
        %v765 = vld [vmem:[%s761 + $0x18] sm:$0xff]
        %v766 = vld [vmem:[%s761 + $0x20] sm:$0xff]
        %v767 = vld [vmem:[%s761 + $0x28] sm:$0xff]
        %v768 = vld [vmem:[%s761 + $0x30] sm:$0xff]
        %v769 = vld [vmem:[%s761 + $0x38] sm:$0xff]
        %v770 = vld [vmem:[%s761 + $0x40] sm:$0xff]
        %v771 = vld [vmem:[%s761 + $0x48] sm:$0xff]
        %v772 = vld [vmem:[%s761 + $0x50] sm:$0xff]
        %v773 = vld [vmem:[%s761 + $0x58] sm:$0xff]
        %v774 = vld [vmem:[%s761 + $0x60] sm:$0xff]
        %v775 = vld [vmem:[%s761 + $0x68] sm:$0xff]
        %v776 = vld [vmem:[%s761 + $0x70] sm:$0xff]
        %v777 = vld [vmem:[%s761 + $0x78] sm:$0xff]
        %s778 = scalar_lea.vmem %s486, 2
        %v779 = vld [vmem:[%s778] sm:$0x3]
        %v781 = vperm.slane %v779, 0
        %v782 = vperm.slane %v779, 1
        %v786 = vsel %vm532, %v760, 0
        %788 = vmatpush.msra.mxu0 0.0
        %789 = vmatpush.msra.mxu0 0.0
        %790 = vmatpush.msra.mxu0 0.0
        %791 = vmatpush.msra.mxu0 0.0
        %792 = vmatpush.msra.mxu0 0.0
        %793 = vmatpush.msra.mxu0 0.0
        %794 = vmatpush.msra.mxu0 0.0
        %795 = vmatpush.msra.mxu0 0.0
        %796 = vmatpush.msra.mxu0 %v776
        %797 = vmatpush.msra.mxu0 %v774
        %798 = vmatpush.msra.mxu0 %v772
        %799 = vmatpush.msra.mxu0 %v770
        %800 = vmatpush.msra.mxu0 %v768
        %801 = vmatpush.msra.mxu0 %v766
        %802 = vmatpush.msra.mxu0 %v764
        %803 = vmatpush.msra.mxu0 %v762
        %804 = vmatmul.f32.gmra.mxu0 %v786
        %v805 = vpop.f32.mrf.mxu0
        %v806 = vadd.f32 %v781, %v805
        %807 = vdwg.mxu0
        %808 = vmatpush.msra.mxu0 0.0
        %809 = vmatpush.msra.mxu0 0.0
        %810 = vmatpush.msra.mxu0 0.0
        %811 = vmatpush.msra.mxu0 0.0
        %812 = vmatpush.msra.mxu0 0.0
        %813 = vmatpush.msra.mxu0 0.0
        %814 = vmatpush.msra.mxu0 0.0
        %815 = vmatpush.msra.mxu0 0.0
        %816 = vmatpush.msra.mxu0 %v777
        %817 = vmatpush.msra.mxu0 %v775
        %818 = vmatpush.msra.mxu0 %v773
        %819 = vmatpush.msra.mxu0 %v771
        %820 = vmatpush.msra.mxu0 %v769
        %821 = vmatpush.msra.mxu0 %v767
        %822 = vmatpush.msra.mxu0 %v765
        %823 = vmatpush.msra.mxu0 %v763
        %824 = vmatmul.f32.gmra.mxu0 %v786
        %v825 = vpop.f32.mrf.mxu0
        %v826 = vadd.f32 %v782, %v825
        %827 = vdwg.mxu0
        %vm828 = vcmp.ge.f32.partialorder %v806, 0.0
        %vm829 = vcmp.ge.f32.partialorder %v826, 0.0
        %v830 = vmul.f32 %v806, 0.2
        %v831 = vmul.f32 %v826, 0.2
        %v832 = vsel %vm828, %v806, %v830
        %v833 = vsel %vm829, %v826, %v831
        %s834 = scalar_lea.vmem %s398, 512 [#allocation7]
        %v835 = vld [vmem:[%s834] sm:$0xff]
        %v836 = vld [vmem:[%s834 + $0x8] sm:$0xff]
        %v837 = vld [vmem:[%s834 + $0x10] sm:$0xff]
        %v838 = vld [vmem:[%s834 + $0x18] sm:$0xff]
        %v839 = vld [vmem:[%s834 + $0x20] sm:$0xff]
        %v840 = vld [vmem:[%s834 + $0x28] sm:$0xff]
        %v841 = vld [vmem:[%s834 + $0x30] sm:$0xff]
        %v842 = vld [vmem:[%s834 + $0x38] sm:$0xff]
        %v843 = vld [vmem:[%s834 + $0x40] sm:$0xff]
        %v844 = vld [vmem:[%s834 + $0x48] sm:$0xff]
        %v845 = vld [vmem:[%s834 + $0x50] sm:$0xff]
        %v846 = vld [vmem:[%s834 + $0x58] sm:$0xff]
        %v847 = vld [vmem:[%s834 + $0x60] sm:$0xff]
        %v848 = vld [vmem:[%s834 + $0x68] sm:$0xff]
        %v849 = vld [vmem:[%s834 + $0x70] sm:$0xff]
        %v850 = vld [vmem:[%s834 + $0x78] sm:$0xff]
        %v851 = vld [vmem:[%s834 + $0x80] sm:$0xff]
        %v852 = vld [vmem:[%s834 + $0x88] sm:$0xff]
        %v853 = vld [vmem:[%s834 + $0x90] sm:$0xff]
        %v854 = vld [vmem:[%s834 + $0x98] sm:$0xff]
        %v855 = vld [vmem:[%s834 + $0xa0] sm:$0xff]
        %v856 = vld [vmem:[%s834 + $0xa8] sm:$0xff]
        %v857 = vld [vmem:[%s834 + $0xb0] sm:$0xff]
        %v858 = vld [vmem:[%s834 + $0xb8] sm:$0xff]
        %v859 = vld [vmem:[%s834 + $0xc0] sm:$0xff]
        %v860 = vld [vmem:[%s834 + $0xc8] sm:$0xff]
        %v861 = vld [vmem:[%s834 + $0xd0] sm:$0xff]
        %v862 = vld [vmem:[%s834 + $0xd8] sm:$0xff]
        %v863 = vld [vmem:[%s834 + $0xe0] sm:$0xff]
        %v864 = vld [vmem:[%s834 + $0xe8] sm:$0xff]
        %v865 = vld [vmem:[%s834 + $0xf0] sm:$0xff]
        %v866 = vld [vmem:[%s834 + $0xf8] sm:$0xff]
        %v867 = vld [vmem:[%s834 + $0x100] sm:$0xff]
        %v868 = vld [vmem:[%s834 + $0x108] sm:$0xff]
        %v869 = vld [vmem:[%s834 + $0x110] sm:$0xff]
        %v870 = vld [vmem:[%s834 + $0x118] sm:$0xff]
        %v871 = vld [vmem:[%s834 + $0x120] sm:$0xff]
        %v872 = vld [vmem:[%s834 + $0x128] sm:$0xff]
        %v873 = vld [vmem:[%s834 + $0x130] sm:$0xff]
        %v874 = vld [vmem:[%s834 + $0x138] sm:$0xff]
        %v875 = vld [vmem:[%s834 + $0x140] sm:$0xff]
        %v876 = vld [vmem:[%s834 + $0x148] sm:$0xff]
        %v877 = vld [vmem:[%s834 + $0x150] sm:$0xff]
        %v878 = vld [vmem:[%s834 + $0x158] sm:$0xff]
        %v879 = vld [vmem:[%s834 + $0x160] sm:$0xff]
        %v880 = vld [vmem:[%s834 + $0x168] sm:$0xff]
        %v881 = vld [vmem:[%s834 + $0x170] sm:$0xff]
        %v882 = vld [vmem:[%s834 + $0x178] sm:$0xff]
        %v883 = vld [vmem:[%s834 + $0x180] sm:$0xff]
        %v884 = vld [vmem:[%s834 + $0x188] sm:$0xff]
        %v885 = vld [vmem:[%s834 + $0x190] sm:$0xff]
        %v886 = vld [vmem:[%s834 + $0x198] sm:$0xff]
        %v887 = vld [vmem:[%s834 + $0x1a0] sm:$0xff]
        %v888 = vld [vmem:[%s834 + $0x1a8] sm:$0xff]
        %v889 = vld [vmem:[%s834 + $0x1b0] sm:$0xff]
        %v890 = vld [vmem:[%s834 + $0x1b8] sm:$0xff]
        %v891 = vld [vmem:[%s834 + $0x1c0] sm:$0xff]
        %v892 = vld [vmem:[%s834 + $0x1c8] sm:$0xff]
        %v893 = vld [vmem:[%s834 + $0x1d0] sm:$0xff]
        %v894 = vld [vmem:[%s834 + $0x1d8] sm:$0xff]
        %v895 = vld [vmem:[%s834 + $0x1e0] sm:$0xff]
        %v896 = vld [vmem:[%s834 + $0x1e8] sm:$0xff]
        %v897 = vld [vmem:[%s834 + $0x1f0] sm:$0xff]
        %v898 = vld [vmem:[%s834 + $0x1f8] sm:$0xff]
        %s899 = scalar_lea.vmem %s408, 2 [#allocation8]
        %v900 = vld [vmem:[%s899] sm:$0x3]
        %v902 = vperm.slane %v900, 0
        %v903 = vperm.slane %v900, 1
        %906 = vmatpush.msra.mxu0 %v865
        %907 = vmatpush.msra.mxu0 %v863
        %908 = vmatpush.msra.mxu0 %v861
        %909 = vmatpush.msra.mxu0 %v859
        %910 = vmatpush.msra.mxu0 %v857
        %911 = vmatpush.msra.mxu0 %v855
        %912 = vmatpush.msra.mxu0 %v853
        %913 = vmatpush.msra.mxu0 %v851
        %914 = vmatpush.msra.mxu0 %v849
        %915 = vmatpush.msra.mxu0 %v847
        %916 = vmatpush.msra.mxu0 %v845
        %917 = vmatpush.msra.mxu0 %v843
        %918 = vmatpush.msra.mxu0 %v841
        %919 = vmatpush.msra.mxu0 %v839
        %920 = vmatpush.msra.mxu0 %v837
        %921 = vmatpush.msra.mxu0 %v835
        %922 = vmatmul.f32.gmra.mxu0 %v832
        %v923 = vpop.f32.mrf.mxu0
        %v924 = vadd.f32 %v902, %v923
        %925 = vdwg.mxu0
        %926 = vmatpush.msra.mxu0 %v897
        %927 = vmatpush.msra.mxu0 %v895
        %928 = vmatpush.msra.mxu0 %v893
        %929 = vmatpush.msra.mxu0 %v891
        %930 = vmatpush.msra.mxu0 %v889
        %931 = vmatpush.msra.mxu0 %v887
        %932 = vmatpush.msra.mxu0 %v885
        %933 = vmatpush.msra.mxu0 %v883
        %934 = vmatpush.msra.mxu0 %v881
        %935 = vmatpush.msra.mxu0 %v879
        %936 = vmatpush.msra.mxu0 %v877
        %937 = vmatpush.msra.mxu0 %v875
        %938 = vmatpush.msra.mxu0 %v873
        %939 = vmatpush.msra.mxu0 %v871
        %940 = vmatpush.msra.mxu0 %v869
        %941 = vmatpush.msra.mxu0 %v867
        %942 = vmatmul.f32.gmra.mxu0 %v833
        %v943 = vpop.f32.mrf.mxu0
        %v944 = vadd.f32 %v924, %v943
        %945 = vdwg.mxu0
        %946 = vmatpush.msra.mxu0 %v866
        %947 = vmatpush.msra.mxu0 %v864
        %948 = vmatpush.msra.mxu0 %v862
        %949 = vmatpush.msra.mxu0 %v860
        %950 = vmatpush.msra.mxu0 %v858
        %951 = vmatpush.msra.mxu0 %v856
        %952 = vmatpush.msra.mxu0 %v854
        %953 = vmatpush.msra.mxu0 %v852
        %954 = vmatpush.msra.mxu0 %v850
        %955 = vmatpush.msra.mxu0 %v848
        %956 = vmatpush.msra.mxu0 %v846
        %957 = vmatpush.msra.mxu0 %v844
        %958 = vmatpush.msra.mxu0 %v842
        %959 = vmatpush.msra.mxu0 %v840
        %960 = vmatpush.msra.mxu0 %v838
        %961 = vmatpush.msra.mxu0 %v836
        %962 = vmatmul.f32.gmra.mxu0 %v832
        %v963 = vpop.f32.mrf.mxu0
        %v964 = vadd.f32 %v903, %v963
        %965 = vdwg.mxu0
        %966 = vmatpush.msra.mxu0 %v898
        %967 = vmatpush.msra.mxu0 %v896
        %968 = vmatpush.msra.mxu0 %v894
        %969 = vmatpush.msra.mxu0 %v892
        %970 = vmatpush.msra.mxu0 %v890
        %971 = vmatpush.msra.mxu0 %v888
        %972 = vmatpush.msra.mxu0 %v886
        %973 = vmatpush.msra.mxu0 %v884
        %974 = vmatpush.msra.mxu0 %v882
        %975 = vmatpush.msra.mxu0 %v880
        %976 = vmatpush.msra.mxu0 %v878
        %977 = vmatpush.msra.mxu0 %v876
        %978 = vmatpush.msra.mxu0 %v874
        %979 = vmatpush.msra.mxu0 %v872
        %980 = vmatpush.msra.mxu0 %v870
        %981 = vmatpush.msra.mxu0 %v868
        %982 = vmatmul.f32.gmra.mxu0 %v833
        %v983 = vpop.f32.mrf.mxu0
        %v984 = vadd.f32 %v964, %v983
        %985 = vdwg.mxu0
        %v988 = vrot.slane %v984, 6
        %v989 = vsel %vm735, %v944, %v988
        %991 = vst [vmem:[%s468 + $0x4] sm:$0xf] %v989
        %s992 = sand.u32 %s220, 1
        %s993 = scalar_lea.sflag [#allocation4], %s992
        %s994 = sand.u32 %s220, 1
        %s995 = smul.addr %s994, 8
        %s996 = scalar_lea.vmem [#allocation10], %s995
        // Predicated region
        $region65: #{tpu_custom_call.1} parent=47 // pred_check
          %p997 = pneg %p230
        $region66: #{tpu_custom_call.1} parent=47 // pred_check_branch
          %999 = sbr.rel (%p997) target = $region68
        $region67: #{tpu_custom_call.1} parent=47 // pred_region
          %s1000 = smul.u32 4, %s30
          %1002 = vsyncadd %s993, 0
          %s1003 = smul.addr %s1000, 2
          %s1004 = scalar_lea.hbm %s7, %s1003
          %s1006 = sshll.u32 %s996, 4
          %s1007 = int_to_ptr.vmem [resolvable:$true] %s1006
          %s1008 = sshll.u32 %s1004, 4
          %s1009 = int_to_ptr.hbm [resolvable:$true] %s1008
          %1011 = dma.vmem_to_hbm [thread:$0]  %s1007, 128, %s1009, %s993
        $region68: #{tpu_custom_call.1} parent=47 // pred_fallthru
          _
      $region48: #{tpu_custom_call.1} parent=5 // pred_fallthru
        _
      %p1012 = scmp.le.s32.totalorder 2, %s25
      // Predicated region
      $region69: #{tpu_custom_call.1} parent=5 // pred_check
        %p1013 = pneg %p1012
      $region70: #{tpu_custom_call.1} parent=5 // pred_check_branch
        %1015 = sbr.rel (%p1013) target = $region72
      $region71: #{tpu_custom_call.1} parent=5 // pred_region
        %s1016 = ssub.s32 %s25, 2
        // Predicated region
        $region73: #{tpu_custom_call.1} parent=71 // pred_check
          %p1017 = pneg %p236
        $region74: #{tpu_custom_call.1} parent=71 // pred_check_branch
          %1019 = sbr.rel (%p1017) target = $region76
        $region75: #{tpu_custom_call.1} parent=71 // pred_region
          %s1020 = sand.u32 %s221, 1
          %s1021 = scalar_lea.sflag [#allocation4], %s1020
          %s1022 = sand.u32 %s221, 1
          %s1023 = smul.addr %s1022, 8
          %s1024 = scalar_lea.vmem [#allocation10], %s1023
          %1026 = dma.done %s1021, 128
        $region76: #{tpu_custom_call.1} parent=71 // pred_fallthru
          _
      $region72: #{tpu_custom_call.1} parent=5 // pred_fallthru
        _
    $region6: #{tpu_custom_call.1} parent=1 // loop_footer
      %s29 = sadd.s32 1, %s25
    $region7: #{tpu_custom_call.1} parent=1 // loop_footer_branch
      %24 = sbr.rel target = $region3
    $region8: #{tpu_custom_call.1} parent=1 // loop_exit
      _
    %1027 = vsyncpa [#allocation3], 1
    %s1028 = scalar_lea.sflag [#allocation3], 1
    %1029 = vsyncpa %s1028, 1
    %1030 = vsyncpa [#allocation6], 1
    %s1031 = scalar_lea.sflag [#allocation6], 1
    %1032 = vsyncpa %s1031, 1
    %1033 = vsyncpa [#allocation9], 1
    %s1034 = scalar_lea.sflag [#allocation9], 1
    %1035 = vsyncpa %s1034, 1
    %1036 = vsyncpa [#allocation4], 1
    %s1037 = scalar_lea.sflag [#allocation4], 1
    %1038 = vsyncpa %s1037, 1

</llo_original>
